<compile_context>
chip_gen: v6e
topology: v6e:2x2x1
jax: 0.10.0
libtpu: 0.0.40
codegen_flags: <defaults>
</compile_context>

<pallas_src>
import functools

import jax
import jax.numpy as jnp
from jax.experimental import pallas as pl
from jax.experimental.pallas import tpu as pltpu


# ---------------------------------------------------------------------------
# small helpers for tile-size selection
# ---------------------------------------------------------------------------
def _largest_divisor(n, cap):
    """Largest divisor of n that is <= cap (>= 1)."""
    cap = max(1, min(n, cap))
    for t in range(cap, 0, -1):
        if n % t == 0:
            return t
    return 1


def _pick_head_block(num_heads, cap=16):
    """Heads per grid step: all heads if small, else a multiple-of-8 divisor."""
    if num_heads <= cap:
        return num_heads
    for hb in range(cap, 0, -1):
        if num_heads % hb == 0 and hb % 8 == 0:
            return hb
    return num_heads  # fallback: full head dim (always layout-legal)


# ---------------------------------------------------------------------------
# Kernel 1: tiled linear projection  y = x @ W.T + b
#   grid = (M//tm, N//tn, K//tk), f32 accumulator in VMEM, weight fed as (K,N)
# ---------------------------------------------------------------------------
def _linear_kernel(x_ref, wt_ref, b_ref, o_ref, acc_ref, *, compute_dtype):
    @pl.when(pl.program_id(2) == 0)
    def _init():
        acc_ref[...] = jnp.zeros_like(acc_ref)

    acc_ref[...] += jnp.dot(
        x_ref[...].astype(compute_dtype),
        wt_ref[...].astype(compute_dtype),
        preferred_element_type=jnp.float32,
    )

    @pl.when(pl.program_id(2) == pl.num_programs(2) - 1)
    def _finalize():
        o_ref[...] = (acc_ref[...] + b_ref[...]).astype(o_ref.dtype)


def linear(x, w, b, *, tm_cap=256, tn_cap=256, tk_cap=512,
           compute_dtype=jnp.float32):
    """x: (M, K), w: (N, K) [nn.Linear layout], b: (N,)  ->  (M, N)."""
    M, K = x.shape
    N = w.shape[0]
    wt = jnp.transpose(w)          # (K, N): transposed once at trace time
    b2 = b.reshape(1, N)

    tm = _largest_divisor(M, tm_cap)
    tn = _largest_divisor(N, tn_cap)
    tk = _largest_divisor(K, tk_cap)

    kernel = functools.partial(_linear_kernel, compute_dtype=compute_dtype)
    return pl.pallas_call(
        kernel,
        out_shape=jax.ShapeDtypeStruct((M, N), x.dtype),
        grid=(M // tm, N // tn, K // tk),
        in_specs=[
            pl.BlockSpec((tm, tk), lambda i, j, k: (i, k)),
            pl.BlockSpec((tk, tn), lambda i, j, k: (k, j)),
            pl.BlockSpec((1, tn), lambda i, j, k: (0, j)),
        ],
        out_specs=pl.BlockSpec((tm, tn), lambda i, j, k: (i, j)),
        scratch_shapes=[pltpu.VMEM((tm, tn), jnp.float32)],
        compiler_params=pltpu.CompilerParams(
            dimension_semantics=("parallel", "parallel", "arbitrary")),
    )(x, wt, b2)


# ---------------------------------------------------------------------------
# Kernel 2a: flash attention (no probs output)
#   grid = (B, H//Hb, T//tq, S//tk); online softmax over the kv axis.
#   q/k/v: (B, H, S, Dh); mask: (B, 1, T, S); output: (B, T, H, Dh)
# ---------------------------------------------------------------------------
def _flash_attn_kernel(q_ref, k_ref, v_ref, mask_ref, o_ref,
                       m_sc, l_sc, acc_sc, *, compute_dtype):
    ki = pl.program_id(3)

    @pl.when(ki == 0)
    def _init():
        m_sc[...] = jnp.full_like(m_sc, -jnp.inf)
        l_sc[...] = jnp.zeros_like(l_sc)
        acc_sc[...] = jnp.zeros_like(acc_sc)

    q = q_ref[0].astype(compute_dtype)            # (Hb, tq, Dh) (scaling folded in)
    k = k_ref[0].astype(compute_dtype)            # (Hb, tk, Dh)
    v = v_ref[0]                                   # (Hb, tk, Dh)
    mask = mask_ref[0, 0].astype(jnp.float32)      # (tq, tk)

    s = jnp.einsum("hqd,hkd->hqk", q, k,
                   preferred_element_type=jnp.float32)        # (Hb, tq, tk)
    s = jnp.maximum(s + mask[None, :, :], jnp.finfo(jnp.float32).min)

    m_prev = m_sc[...]                                         # (Hb, tq, 1)
    m_new = jnp.maximum(m_prev, jnp.max(s, axis=-1, keepdims=True))
    alpha = jnp.exp(m_prev - m_new)
    p = jnp.exp(s - m_new)
    l_sc[...] = alpha * l_sc[...] + jnp.sum(p, axis=-1, keepdims=True)
    acc_sc[...] = alpha * acc_sc[...] + jnp.einsum(
        "hqk,hkd->hqd", p.astype(compute_dtype), v.astype(compute_dtype),
        preferred_element_type=jnp.float32)
    m_sc[...] = m_new

    @pl.when(ki == pl.num_programs(3) - 1)
    def _finalize():
        # approx=True would move this onto the EUP; kept exact so the fp32
        # reference check at 1e-4 holds.
        inv_l = pl.reciprocal(l_sc[...], approx=False)          # (Hb, tq, 1)
        out = acc_sc[...] * inv_l                                # (Hb, tq, Dh)
        for h in range(out.shape[0]):      # lane-dense (B, T, H*Dh) slab
            o_ref[0, :, h, :] = out[h].astype(o_ref.dtype)


def flash_attention(q, k, v, attention_mask, *, tq_cap=128, tk_cap=128,
                    head_block=None, compute_dtype=jnp.float32):
    """q,k,v: (B, H, S, Dh); mask: (B, 1, T, S).  Returns (B, T, H, Dh)."""
    B, H, T, Dh = q.shape
    S = k.shape[2]
    Hb = head_block if head_block is not None else _pick_head_block(H)
    tq = _largest_divisor(T, tq_cap)
    tk = _largest_divisor(S, tk_cap)

    kernel = functools.partial(_flash_attn_kernel, compute_dtype=compute_dtype)
    return pl.pallas_call(
        kernel,
        out_shape=jax.ShapeDtypeStruct((B, T, H, Dh), q.dtype),
        grid=(B, H // Hb, T // tq, S // tk),
        in_specs=[
            pl.BlockSpec((1, Hb, tq, Dh), lambda b, hb, qi, ki: (b, hb, qi, 0)),
            pl.BlockSpec((1, Hb, tk, Dh), lambda b, hb, qi, ki: (b, hb, ki, 0)),
            pl.BlockSpec((1, Hb, tk, Dh), lambda b, hb, qi, ki: (b, hb, ki, 0)),
            pl.BlockSpec((1, 1, tq, tk), lambda b, hb, qi, ki: (b, 0, qi, ki)),
        ],
        out_specs=pl.BlockSpec((1, tq, Hb, Dh),
                               lambda b, hb, qi, ki: (b, qi, hb, 0)),
        scratch_shapes=[
            pltpu.VMEM((Hb, tq, 1), jnp.float32),   # running max
            pltpu.VMEM((Hb, tq, 1), jnp.float32),   # running denom
            pltpu.VMEM((Hb, tq, Dh), jnp.float32),  # running numerator
        ],
        compiler_params=pltpu.CompilerParams(
            dimension_semantics=("parallel", "parallel", "parallel", "arbitrary")),
    )(q, k, v, attention_mask)


# ---------------------------------------------------------------------------
# Kernel 2b: attention with explicit probability output (output_attentions=True)
#   grid = (B, H//Hb, T//tq); full softmax over S per query block.
# ---------------------------------------------------------------------------
def _attn_probs_kernel(q_ref, k_ref, v_ref, mask_ref, o_ref, p_ref, *,
                       compute_dtype):
    q = q_ref[0].astype(compute_dtype)            # (Hb, tq, Dh)
    k = k_ref[0].astype(compute_dtype)            # (Hb, S, Dh)
    v = v_ref[0]                                   # (Hb, S, Dh)
    mask = mask_ref[0, 0].astype(jnp.float32)      # (tq, S)

    s = jnp.einsum("hqd,hkd->hqk", q, k, preferred_element_type=jnp.float32)
    s = jnp.maximum(s + mask[None, :, :], jnp.finfo(jnp.float32).min)
    m = jnp.max(s, axis=-1, keepdims=True)
    e = jnp.exp(s - m)
    p = e / jnp.sum(e, axis=-1, keepdims=True)     # exact softmax (returned)
    o = jnp.einsum("hqk,hkd->hqd", p.astype(compute_dtype),
                   v.astype(compute_dtype), preferred_element_type=jnp.float32)

    p_ref[0] = p.astype(p_ref.dtype)               # (Hb, tq, S)
    for h in range(o.shape[0]):
        o_ref[0, :, h, :] = o[h].astype(o_ref.dtype)


def attention_with_probs(q, k, v, attention_mask, *, tq_cap=128,
                         head_block=None, compute_dtype=jnp.float32):
    B, H, T, Dh = q.shape
    S = k.shape[2]
    Hb = head_block if head_block is not None else _pick_head_block(H)
    tq = _largest_divisor(T, tq_cap)

    kernel = functools.partial(_attn_probs_kernel, compute_dtype=compute_dtype)
    out, probs = pl.pallas_call(
        kernel,
        out_shape=(jax.ShapeDtypeStruct((B, T, H, Dh), q.dtype),
                   jax.ShapeDtypeStruct((B, H, T, S), jnp.float32)),
        grid=(B, H // Hb, T // tq),
        in_specs=[
            pl.BlockSpec((1, Hb, tq, Dh), lambda b, hb, qi: (b, hb, qi, 0)),
            pl.BlockSpec((1, Hb, S, Dh), lambda b, hb, qi: (b, hb, 0, 0)),
            pl.BlockSpec((1, Hb, S, Dh), lambda b, hb, qi: (b, hb, 0, 0)),
            pl.BlockSpec((1, 1, tq, S), lambda b, hb, qi: (b, 0, qi, 0)),
        ],
        out_specs=(
            pl.BlockSpec((1, tq, Hb, Dh), lambda b, hb, qi: (b, qi, hb, 0)),
            pl.BlockSpec((1, Hb, tq, S), lambda b, hb, qi: (b, hb, qi, 0)),
        ),
        compiler_params=pltpu.CompilerParams(
            dimension_semantics=("parallel", "parallel", "parallel")),
    )(q, k, v, attention_mask)
    return out, probs


# ---------------------------------------------------------------------------
# Full module forward (glue in plain JAX, hot paths in Pallas kernels)
# ---------------------------------------------------------------------------
def opt_quantized_attention(hidden_states, params, attention_mask=None, *,
                            num_heads, is_decoder=True, output_attentions=False,
                            compute_dtype=jnp.float32):
    bsz, tgt_len, embed_dim = hidden_states.shape
    head_dim = embed_dim // num_heads
    scaling = head_dim ** (-0.5)

    # Fused QKV projection; scaling folded into the Q weight/bias (trace time).
    w_qkv = jnp.concatenate(
        [params["q_w"] * scaling, params["k_w"], params["v_w"]], axis=0)   # (3E, E)
    b_qkv = jnp.concatenate(
        [params["q_b"] * scaling, params["k_b"], params["v_b"]], axis=0)   # (3E,)

    x2d = hidden_states.reshape(bsz * tgt_len, embed_dim)
    qkv = linear(x2d, w_qkv, b_qkv, compute_dtype=compute_dtype)           # (M, 3E)

    qkv = qkv.reshape(bsz, tgt_len, 3, num_heads, head_dim)
    q_h = qkv[:, :, 0].transpose(0, 2, 1, 3)     # (B, H, T, Dh)
    k_h = qkv[:, :, 1].transpose(0, 2, 1, 3)     # (B, H, S, Dh)  -> past_key_value
    v_h = qkv[:, :, 2].transpose(0, 2, 1, 3)     # (B, H, S, Dh)  -> past_key_value

    if attention_mask is None:
        attention_mask = jnp.zeros((bsz, 1, tgt_len, tgt_len),
                                   hidden_states.dtype)

    if output_attentions:
        attn_out, probs = attention_with_probs(
            q_h, k_h, v_h, attention_mask, compute_dtype=compute_dtype)
        attn_weights_reshaped = probs                     # (B, H, T, S)
    else:
        # Common case: no probs computed or written (saves the (B,H,T,S) HBM write).
        attn_out = flash_attention(
            q_h, k_h, v_h, attention_mask, compute_dtype=compute_dtype)
        attn_weights_reshaped = None

    # attn_out is already (B, T, H, Dh): the (B*T, E) view is a free reshape.
    attn_out2d = attn_out.reshape(bsz * tgt_len, embed_dim)
    out = linear(attn_out2d, params["o_w"], params["o_b"],
                 compute_dtype=compute_dtype).reshape(bsz, tgt_len, embed_dim)

    past_key_value = (k_h, v_h) if is_decoder else None
    return out, attn_weights_reshaped, past_key_value


# ---------------------------------------------------------------------------
# Pure-JAX reference for correctness checking
# ---------------------------------------------------------------------------
def _reference(hidden_states, params, attention_mask, num_heads):
    bsz, tgt_len, embed_dim = hidden_states.shape
    head_dim = embed_dim // num_heads
    scaling = head_dim ** (-0.5)

    def lin(x, w, b):
        return x @ w.T + b

    q = lin(hidden_states, params["q_w"], params["q_b"]) * scaling
    k = lin(hidden_states, params["k_w"], params["k_b"])
    v = lin(hidden_states, params["v_w"], params["v_b"])

    def shape(t):
        return t.reshape(bsz, tgt_len, num_heads, head_dim).transpose(0, 2, 1, 3)

    qh, kh, vh = shape(q), shape(k), shape(v)
    s = jnp.einsum("bhtd,bhsd->bhts", qh, kh) + attention_mask
    s = jnp.maximum(s, jnp.finfo(jnp.float32).min)
    p = jax.nn.softmax(s, axis=-1)
    o_bthd = jnp.einsum("bhts,bhsd->bthd", p, vh)            # (B, T, H, Dh)
    o = o_bthd.reshape(bsz, tgt_len, embed_dim)
    out = lin(o, params["o_w"], params["o_b"])
    return out, p, kh, vh, o_bthd, qh


if __name__ == "__main__":
    # Small shapes consistent with the module.
    bsz, tgt_len, embed_dim, num_heads = 2, 16, 32, 4

    key = jax.random.PRNGKey(0)
    keys = jax.random.split(key, 10)

    def mk_w(k):
        return jax.random.normal(k, (embed_dim, embed_dim), jnp.float32) * 0.05

    def mk_b(k):
        return jax.random.normal(k, (embed_dim,), jnp.float32) * 0.01

    params = {
        "q_w": mk_w(keys[0]), "q_b": mk_b(keys[1]),
        "k_w": mk_w(keys[2]), "k_b": mk_b(keys[3]),
        "v_w": mk_w(keys[4]), "v_b": mk_b(keys[5]),
        "o_w": mk_w(keys[6]), "o_b": mk_b(keys[7]),
    }

    hidden_states = jax.random.normal(keys[8], (bsz, tgt_len, embed_dim),
                                      jnp.float32)

    # Causal attention mask, shape (bsz, 1, tgt_len, src_len), additive.
    neg = jnp.finfo(jnp.float32).min
    causal = jnp.triu(jnp.full((tgt_len, tgt_len), neg, jnp.float32), k=1)
    attention_mask = jnp.broadcast_to(causal, (bsz, 1, tgt_len, tgt_len))

    # --- default path (flash, no probs) ---
    out, attn_w, past_kv = opt_quantized_attention(
        hidden_states, params, attention_mask, num_heads=num_heads,
        is_decoder=True, output_attentions=False)
    out = jax.block_until_ready(out)

    # --- output_attentions path ---
    out_a, attn_w_a, _ = opt_quantized_attention(
        hidden_states, params, attention_mask, num_heads=num_heads,
        is_decoder=True, output_attentions=True)
    out_a = jax.block_until_ready(out_a)

    ref_out, ref_p, ref_k, ref_v, ref_o_bthd, ref_q = _reference(
        hidden_states, params, attention_mask, num_heads)

    head_dim = embed_dim // num_heads
    assert out.shape == (bsz, tgt_len, embed_dim)
    assert attn_w is None
    assert attn_w_a.shape == (bsz, num_heads, tgt_len, tgt_len)
    assert past_kv[0].shape == (bsz, num_heads, tgt_len, head_dim)

    assert jnp.allclose(out, ref_out, atol=1e-4, rtol=1e-4), "flash path mismatch"
    assert jnp.allclose(out_a, ref_out, atol=1e-4, rtol=1e-4), "probs path mismatch"
    assert jnp.allclose(attn_w_a, ref_p, atol=1e-4, rtol=1e-4), "probs mismatch"
    assert jnp.allclose(past_kv[0], ref_k, atol=1e-4, rtol=1e-4), "k mismatch"
    assert jnp.allclose(past_kv[1], ref_v, atol=1e-4, rtol=1e-4), "v mismatch"

    # Exercise the multi-block online-softmax path explicitly (2x2 q/kv blocks,
    # including a fully-masked upper-triangular kv block).
    o_small = flash_attention(ref_q, ref_k, ref_v, attention_mask,
                              tq_cap=8, tk_cap=8)
    o_small = jax.block_until_ready(o_small)
    assert jnp.allclose(o_small, ref_o_bthd, atol=1e-4, rtol=1e-4), \
        "online-softmax multi-block mismatch"

    print("KERNEL_OK")
</pallas_src>

<mosaic_0001>
module attributes {stable_mosaic.version = 11 : i64} {
  func.func @_linear_kernel(%arg0: i32, %arg1: i32, %arg2: i32, %arg3: memref<32x32xf32, #tpu.memory_space<vmem>>, %arg4: memref<32x96xf32, #tpu.memory_space<vmem>>, %arg5: memref<1x96xf32, #tpu.memory_space<vmem>>, %arg6: memref<32x96xf32, #tpu.memory_space<vmem>>, %arg7: memref<32x96xf32, #tpu.memory_space<vmem>>) attributes {dimension_semantics = [#tpu.dimension_semantics<parallel>, #tpu.dimension_semantics<parallel>, #tpu.dimension_semantics<arbitrary>], iteration_bounds = array<i64: 1, 1, 1>, scalar_prefetch = 0 : i64, scratch_operands = 1 : i64, tpu.core_type = #tpu.core_type<tc>, window_params = [{transform_indices = @transform_0, window_bounds = array<i64: 32, 32>}, {transform_indices = @transform_1, window_bounds = array<i64: 32, 96>}, {transform_indices = @transform_2, window_bounds = array<i64: 1, 96>}, {transform_indices = @transform_3, window_bounds = array<i64: 32, 96>}]} {
    %c0_i32 = arith.constant 0 : i32
    %0 = arith.cmpi eq, %arg2, %c0_i32 : i32
    %1 = arith.extui %0 : i1 to i32
    %c0_i32_0 = arith.constant 0 : i32
    %2 = arith.cmpi ne, %1, %c0_i32_0 : i32
    scf.if %2 {
      %cst_10 = arith.constant 0.000000e+00 : f32
      %12 = vector.broadcast %cst_10 : f32 to vector<32x96xf32>
      %c0_11 = arith.constant 0 : index
      %c0_12 = arith.constant 0 : index
      %13 = vector.load %arg7[%c0_11, %c0_12] : memref<32x96xf32, #tpu.memory_space<vmem>>, vector<32x96xf32>
      tpu.vector_store %arg7[%c0_11, %c0_12], %12 {strides = array<i32>} : memref<32x96xf32, #tpu.memory_space<vmem>>, vector<32x96xf32>,
    } else {
    }
    %c0 = arith.constant 0 : index
    %c0_1 = arith.constant 0 : index
    %3 = vector.load %arg7[%c0, %c0_1] : memref<32x96xf32, #tpu.memory_space<vmem>>, vector<32x96xf32>
    %c0_2 = arith.constant 0 : index
    %c0_3 = arith.constant 0 : index
    %4 = vector.load %arg3[%c0_2, %c0_3] : memref<32x32xf32, #tpu.memory_space<vmem>>, vector<32x32xf32>
    %c0_4 = arith.constant 0 : index
    %c0_5 = arith.constant 0 : index
    %5 = vector.load %arg4[%c0_4, %c0_5] : memref<32x96xf32, #tpu.memory_space<vmem>>, vector<32x96xf32>
    %cst = arith.constant dense<0.000000e+00> : vector<32x96xf32>
    %6 = tpu.matmul %4, %5, %cst {dimension_numbers = #tpu.dot_dimension_numbers<[1], [0], [0], [1], [0, 0, 1, 1], [], []>} : vector<32x32xf32>, vector<32x96xf32>, vector<32x96xf32> -> vector<32x96xf32>
    %7 = arith.addf %3, %6 : vector<32x96xf32>
    %c0_6 = arith.constant 0 : index
    %c0_7 = arith.constant 0 : index
    %8 = vector.load %arg7[%c0_6, %c0_7] : memref<32x96xf32, #tpu.memory_space<vmem>>, vector<32x96xf32>
    tpu.vector_store %arg7[%c0_6, %c0_7], %7 {strides = array<i32>} : memref<32x96xf32, #tpu.memory_space<vmem>>, vector<32x96xf32>,
    %c0_i32_8 = arith.constant 0 : i32
    %9 = arith.cmpi eq, %arg2, %c0_i32_8 : i32
    %10 = arith.extui %9 : i1 to i32
    %c0_i32_9 = arith.constant 0 : i32
    %11 = arith.cmpi ne, %10, %c0_i32_9 : i32
    scf.if %11 {
      %c0_10 = arith.constant 0 : index
      %c0_11 = arith.constant 0 : index
      %12 = vector.load %arg7[%c0_10, %c0_11] : memref<32x96xf32, #tpu.memory_space<vmem>>, vector<32x96xf32>
      %c0_12 = arith.constant 0 : index
      %c0_13 = arith.constant 0 : index
      %13 = vector.load %arg5[%c0_12, %c0_13] : memref<1x96xf32, #tpu.memory_space<vmem>>, vector<1x96xf32>
      %14 = vector.broadcast %13 : vector<1x96xf32> to vector<32x96xf32>
      %15 = arith.addf %12, %14 : vector<32x96xf32>
      %c0_14 = arith.constant 0 : index
      %c0_15 = arith.constant 0 : index
      %16 = vector.load %arg6[%c0_14, %c0_15] : memref<32x96xf32, #tpu.memory_space<vmem>>, vector<32x96xf32>
      tpu.vector_store %arg6[%c0_14, %c0_15], %15 {strides = array<i32>} : memref<32x96xf32, #tpu.memory_space<vmem>>, vector<32x96xf32>,
    } else {
    }
    return
  }
  func.func @transform_0(%arg0: i32, %arg1: i32, %arg2: i32) -> (i32, i32) {
    %c0_i32 = arith.constant 0 : i32
    return %arg0, %arg2 : i32, i32
  }
  func.func @transform_1(%arg0: i32, %arg1: i32, %arg2: i32) -> (i32, i32) {
    %c0_i32 = arith.constant 0 : i32
    return %arg2, %arg1 : i32, i32
  }
  func.func @transform_2(%arg0: i32, %arg1: i32, %arg2: i32) -> (i32, i32) {
    %c0_i32 = arith.constant 0 : i32
    %c0_i32_0 = arith.constant 0 : i32
    return %c0_i32, %arg1 : i32, i32
  }
  func.func @transform_3(%arg0: i32, %arg1: i32, %arg2: i32) -> (i32, i32) {
    %c0_i32 = arith.constant 0 : i32
    return %arg0, %arg1 : i32, i32
  }
}

</mosaic_0001>

<llo_original>
// kernel: tpu_custom_call.1
$region0: #{tpu_custom_call.1}
  #allocation0 [shape = 'u32[]', space=smem, size = 0x4, offset = 0x4, fixed_abs, tag = 'smem constant byte address 0x4 - core index']
  #allocation1 [shape = 'u32[144,128]{1,0:T(1,128)}', space=vmem, size = 0x12000, scoped, tag = 'internal scratch']
  #allocation2 [shape = 'f32[32,96]{1,0:T(8,128)}', space=vmem, size = 0x4000, scoped, tag = 'scratch operand']
  %s0 = inlined_call_operand.hbm [shape: f32[32,32], index: 0, kind: input, shape index: {}]
  %s1 = inlined_call_operand.hbm [shape: f32[32,96], index: 1, kind: input, shape index: {}]
  %s2 = inlined_call_operand.vmem [shape: f32[1,96], index: 2, kind: input, shape index: {}]
  %s3 = inlined_call_operand.hbm [shape: f32[32,96], index: 3, kind: output, shape index: {}]
  %s4 = sld [smem:[#allocation0]]
  $region38: #{tpu_custom_call.1} parent=0
    _
  %s6 = ssub.s32 1, %s4
  %s7 = scalar_select 0, %s6, %s4
  $region1: #{tpu_custom_call.1} parent=0
    #allocation3 [shape = 'u8[16384]{0}', space=vmem, size = 0x4000, scoped, tag = 'input window, operand 0, single buffered']
    #allocation4 [shape = 's32[1]{0}', space=sflag, size = 0x4, scoped, tag = 'scoped memory for tpu_custom_call.1']
    #allocation5 [shape = 's32[1]{0}', space=sflag, size = 0x4, scoped, tag = 'scoped memory for tpu_custom_call.1']
    #allocation6 [shape = 'u8[16384]{0}', space=vmem, size = 0x4000, scoped, tag = 'input window, operand 1, single buffered']
    #allocation7 [shape = 's32[1]{0}', space=sflag, size = 0x4, scoped, tag = 'scoped memory for tpu_custom_call.1']
    #allocation8 [shape = 'u8[16384]{0}', space=vmem, size = 0x4000, scoped, tag = 'output window, operand 0, single buffered']
    %8 = vsyncpa [#allocation4], 0
    %9 = vsyncpa [#allocation7], 0
    %10 = vsyncpa [#allocation5], 0
    // Predicated region
    $region2: #{tpu_custom_call.1} parent=1 // pred_check
      _
    $region3: #{tpu_custom_call.1} parent=1 // pred_check_branch
      %12 = sbr.rel (0) target = $region5
    $region4: #{tpu_custom_call.1} parent=1 // pred_region
      %s14 = ssub.s32 512, 512
      %15 = vsyncadd [#allocation4], %s14
      %s16 = sshll.u32 [#allocation3], 4
      %s17 = int_to_ptr.vmem [resolvable:$true] %s16
      %22 = dma.hbm_to_vmem [thread:$0]  %s0, 512, %s17, [#allocation4], 128, 128, 8
    $region5: #{tpu_custom_call.1} parent=1 // pred_fallthru
      _
    // Predicated region
    $region6: #{tpu_custom_call.1} parent=1 // pred_check
      _
    $region7: #{tpu_custom_call.1} parent=1 // pred_check_branch
      %24 = sbr.rel (0) target = $region9
    $region8: #{tpu_custom_call.1} parent=1 // pred_region
      %s26 = ssub.s32 512, 512
      %27 = vsyncadd [#allocation7], %s26
      %s28 = sshll.u32 [#allocation6], 4
      %s29 = int_to_ptr.vmem [resolvable:$true] %s28
      %34 = dma.hbm_to_vmem [thread:$0]  %s1, 512, %s29, [#allocation7], 128, 128, 8
    $region9: #{tpu_custom_call.1} parent=1 // pred_fallthru
      _
    // Predicated region
    $region10: #{tpu_custom_call.1} parent=1 // pred_check
      _
    $region11: #{tpu_custom_call.1} parent=1 // pred_check_branch
      %36 = sbr.rel (0) target = $region13
    $region12: #{tpu_custom_call.1} parent=1 // pred_region
      _
    $region13: #{tpu_custom_call.1} parent=1 // pred_fallthru
      _
    // Predicated region
    $region14: #{tpu_custom_call.1} parent=1 // pred_check
      _
    $region15: #{tpu_custom_call.1} parent=1 // pred_check_branch
      %38 = sbr.rel (0) target = $region17
    $region16: #{tpu_custom_call.1} parent=1 // pred_region
      %39 = dma.done [#allocation4], 512
    $region17: #{tpu_custom_call.1} parent=1 // pred_fallthru
      _
    // Predicated region
    $region18: #{tpu_custom_call.1} parent=1 // pred_check
      _
    $region19: #{tpu_custom_call.1} parent=1 // pred_check_branch
      %41 = sbr.rel (0) target = $region21
    $region20: #{tpu_custom_call.1} parent=1 // pred_region
      %42 = dma.done [#allocation7], 512
    $region21: #{tpu_custom_call.1} parent=1 // pred_fallthru
      _
    %p43 = scmp.eq.s32.totalorder 0, 0
    // Predicated region
    $region22: #{tpu_custom_call.1} parent=1 // pred_check
      %p44 = pneg %p43
    $region23: #{tpu_custom_call.1} parent=1 // pred_check_branch
      %46 = sbr.rel (%p44) target = $region25
    $region24: #{tpu_custom_call.1} parent=1 // pred_region
      %vm47 = vcmask 785408
      %48 = vst.msk [vmem:[#allocation2] sm:$0xff] %vm47, 0.0
      %49 = vst.msk [vmem:[#allocation2 + $0x8] sm:$0xff] %vm47, 0.0
      %50 = vst.msk [vmem:[#allocation2 + $0x10] sm:$0xff] %vm47, 0.0
      %51 = vst.msk [vmem:[#allocation2 + $0x18] sm:$0xff] %vm47, 0.0
    $region25: #{tpu_custom_call.1} parent=1 // pred_fallthru
      _
    %v52 = vld [vmem:[#allocation2] sm:$0xff]
    %v53 = vld [vmem:[#allocation2 + $0x8] sm:$0xff]
    %v54 = vld [vmem:[#allocation2 + $0x10] sm:$0xff]
    %v55 = vld [vmem:[#allocation2 + $0x18] sm:$0xff]
    %v56 = vld [vmem:[#allocation3] sm:$0xff]
    %v57 = vld [vmem:[#allocation3 + $0x8] sm:$0xff]
    %v58 = vld [vmem:[#allocation3 + $0x10] sm:$0xff]
    %v59 = vld [vmem:[#allocation3 + $0x18] sm:$0xff]
    %v60 = vld [vmem:[#allocation6] sm:$0xff]
    %v61 = vld [vmem:[#allocation6 + $0x8] sm:$0xff]
    %v62 = vld [vmem:[#allocation6 + $0x10] sm:$0xff]
    %v63 = vld [vmem:[#allocation6 + $0x18] sm:$0xff]
    %vm64 = vcmask 261120
    %v66 = vsel %vm64, %v56, 0
    %v69 = vsel %vm64, %v57, 0
    %v72 = vsel %vm64, %v58, 0
    %v75 = vsel %vm64, %v59, 0
    %77 = vmatprep.subr.mxu0 0.0
    %78 = vmatpush1.msra.mxu0 0.0
    %79 = vmatprep.subr.mxu0 0.0
    %80 = vmatpush1.msra.mxu0 0.0
    %81 = vmatprep.subr.mxu0 0.0
    %82 = vmatpush1.msra.mxu0 0.0
    %83 = vmatprep.subr.mxu0 0.0
    %84 = vmatpush1.msra.mxu0 0.0
    %85 = vmatprep.subr.mxu0 0.0
    %86 = vmatpush1.msra.mxu0 0.0
    %87 = vmatprep.subr.mxu0 0.0
    %88 = vmatpush1.msra.mxu0 0.0
    %89 = vmatprep.subr.mxu0 0.0
    %90 = vmatpush1.msra.mxu0 0.0
    %91 = vmatprep.subr.mxu0 0.0
    %92 = vmatpush1.msra.mxu0 0.0
    %93 = vmatprep.subr.mxu0 0.0
    %94 = vmatpush1.msra.mxu0 0.0
    %95 = vmatprep.subr.mxu0 0.0
    %96 = vmatpush1.msra.mxu0 0.0
    %97 = vmatprep.subr.mxu0 0.0
    %98 = vmatpush1.msra.mxu0 0.0
    %99 = vmatprep.subr.mxu0 0.0
    %100 = vmatpush1.msra.mxu0 0.0
    %101 = vmatprep.subr.mxu0 0.0
    %102 = vmatpush1.msra.mxu0 %v63
    %103 = vmatprep.subr.mxu0 0.0
    %104 = vmatpush1.msra.mxu0 %v62
    %105 = vmatprep.subr.mxu0 0.0
    %106 = vmatpush1.msra.mxu0 %v61
    %107 = vmatprep.subr.mxu0 0.0
    %108 = vmatpush1.msra.mxu0 %v60
    %109 = vmatprep.subr.mxu0 0.0
    %110 = vmatpush2.msra.mxu0 0.0
    %111 = vmatprep.subr.mxu0 0.0
    %112 = vmatpush2.msra.mxu0 0.0
    %113 = vmatprep.subr.mxu0 0.0
    %114 = vmatpush2.msra.mxu0 0.0
    %115 = vmatprep.subr.mxu0 0.0
    %116 = vmatpush2.msra.mxu0 0.0
    %117 = vmatprep.subr.mxu0 0.0
    %118 = vmatpush2.msra.mxu0 0.0
    %119 = vmatprep.subr.mxu0 0.0
    %120 = vmatpush2.msra.mxu0 0.0
    %121 = vmatprep.subr.mxu0 0.0
    %122 = vmatpush2.msra.mxu0 0.0
    %123 = vmatprep.subr.mxu0 0.0
    %124 = vmatpush2.msra.mxu0 0.0
    %125 = vmatprep.subr.mxu0 0.0
    %126 = vmatpush2.msra.mxu0 0.0
    %127 = vmatprep.subr.mxu0 0.0
    %128 = vmatpush2.msra.mxu0 0.0
    %129 = vmatprep.subr.mxu0 0.0
    %130 = vmatpush2.msra.mxu0 0.0
    %131 = vmatprep.subr.mxu0 0.0
    %132 = vmatpush2.msra.mxu0 0.0
    %133 = vmatprep.subr.mxu0 0.0
    %134 = vmatpush2.msra.mxu0 0.0
    %135 = vmatprep.subr.mxu0 0.0
    %136 = vmatpush2.msra.mxu0 0.0
    %137 = vmatprep.subr.mxu0 0.0
    %138 = vmatpush2.msra.mxu0 0.0
    %139 = vmatprep.subr.mxu0 0.0
    %140 = vmatpush2.msra.mxu0 0.0
    %141 = vmatprep.mubr.f32.mxu0 0.0
    %142 = vmatmul.mubr.f32.gmra.mxu0 %v66
    %v143 = vpop.f32.mrf.mxu0
    %v144 = vadd.f32 0.0, %v143
    %v145 = vpop.f32.mrf.mxu0
    %146 = vmatprep.mubr.f32.mxu0 0.0
    %147 = vmatmul.mubr.f32.gmra.mxu0 %v69
    %v148 = vpop.f32.mrf.mxu0
    %v149 = vadd.f32 0.0, %v148
    %v150 = vpop.f32.mrf.mxu0
    %151 = vmatprep.mubr.f32.mxu0 0.0
    %152 = vmatmul.mubr.f32.gmra.mxu0 %v72
    %v153 = vpop.f32.mrf.mxu0
    %v154 = vadd.f32 0.0, %v153
    %v155 = vpop.f32.mrf.mxu0
    %156 = vmatprep.mubr.f32.mxu0 0.0
    %157 = vmatmul.mubr.f32.gmra.mxu0 %v75
    %v158 = vpop.f32.mrf.mxu0
    %v159 = vadd.f32 0.0, %v158
    %v160 = vpop.f32.mrf.mxu0
    %161 = vdwg.mxu0
    %v162 = vadd.f32 %v52, %v144
    %v163 = vadd.f32 %v53, %v149
    %v164 = vadd.f32 %v54, %v154
    %v165 = vadd.f32 %v55, %v159
    %vm166 = vcmask 785408
    %167 = vst.msk [vmem:[#allocation2] sm:$0xff] %vm166, %v162
    %168 = vst.msk [vmem:[#allocation2 + $0x8] sm:$0xff] %vm166, %v163
    %169 = vst.msk [vmem:[#allocation2 + $0x10] sm:$0xff] %vm166, %v164
    %170 = vst.msk [vmem:[#allocation2 + $0x18] sm:$0xff] %vm166, %v165
    // Predicated region
    $region26: #{tpu_custom_call.1} parent=1 // pred_check
      %p171 = pneg %p43
    $region27: #{tpu_custom_call.1} parent=1 // pred_check_branch
      %173 = sbr.rel (%p171) target = $region29
    $region28: #{tpu_custom_call.1} parent=1 // pred_region
      %v174 = vld [vmem:[#allocation2] sm:$0xff]
      %v175 = vld [vmem:[#allocation2 + $0x8] sm:$0xff]
      %v176 = vld [vmem:[#allocation2 + $0x10] sm:$0xff]
      %v177 = vld [vmem:[#allocation2 + $0x18] sm:$0xff]
      %v178 = vld [vmem:[%s2] sm:$0x1]
      %v180 = vlaneseq
      %v181 = vshrl.u32 %v180, 7
      %v182 = vsub.s32 0, %v181
      %v183 = vrot.slane %v178, %v182
      %v185 = vadd.f32 %v174, %v183
      %v186 = vadd.f32 %v175, %v183
      %v187 = vadd.f32 %v176, %v183
      %v188 = vadd.f32 %v177, %v183
      %189 = vst.msk [vmem:[#allocation8] sm:$0xff] %vm166, %v185
      %190 = vst.msk [vmem:[#allocation8 + $0x8] sm:$0xff] %vm166, %v186
      %191 = vst.msk [vmem:[#allocation8 + $0x10] sm:$0xff] %vm166, %v187
      %192 = vst.msk [vmem:[#allocation8 + $0x18] sm:$0xff] %vm166, %v188
    $region29: #{tpu_custom_call.1} parent=1 // pred_fallthru
      _
    // Predicated region
    $region30: #{tpu_custom_call.1} parent=1 // pred_check
      _
    $region31: #{tpu_custom_call.1} parent=1 // pred_check_branch
      %194 = sbr.rel (0) target = $region33
    $region32: #{tpu_custom_call.1} parent=1 // pred_region
      %s196 = ssub.s32 512, 512
      %197 = vsyncadd [#allocation5], %s196
      %s198 = sshll.u32 [#allocation8], 4
      %s199 = int_to_ptr.vmem [resolvable:$true] %s198
      %204 = dma.vmem_to_hbm [thread:$0]  %s199, 512, %s3, [#allocation5], 128, 128, 8
    $region33: #{tpu_custom_call.1} parent=1 // pred_fallthru
      _
    // Predicated region
    $region34: #{tpu_custom_call.1} parent=1 // pred_check
      _
    $region35: #{tpu_custom_call.1} parent=1 // pred_check_branch
      %206 = sbr.rel (0) target = $region37
    $region36: #{tpu_custom_call.1} parent=1 // pred_region
      %207 = dma.done [#allocation5], 512
    $region37: #{tpu_custom_call.1} parent=1 // pred_fallthru
      _
    %208 = vsyncpa [#allocation4], 1
    %209 = vsyncpa [#allocation7], 1
    %210 = vsyncpa [#allocation5], 1

</llo_original>
